<compile_context>
chip_gen: v6e
topology: v6e:2x2x1
jax: 0.10.0
libtpu: 0.0.40
codegen_flags: <defaults>
</compile_context>

<pallas_src>
import numpy as np
import jax
import jax.numpy as jnp
from jax.experimental import pallas as pl
from jax.experimental.pallas import tpu as pltpu

# ---- small config consistent with RNNPacked(vocab, dim_embeddings, hidden, n_classes) ----
B = 2      # batch
T = 8      # sequence length
V = 32     # vocab_size
E = 32     # dim_embeddings
H = 32     # hidden_nodes
NC = 4     # n_classes

assert E == H, "packed-weight layout below assumes dim_embeddings == hidden_nodes"


def rnn_packed_kernel(tok_ref, wpack_ref, opack_ref, out_ref):
    """Embedding -> Elman RNN (tanh, h0=0) -> last hidden state -> Linear.

    tok_ref   : (T*B, 1) int32, time-major token ids (row n -> timestep n//B, batch n%B)
    wpack_ref : (V+E+H+1, H) f32  = [emb ; W_ih^T ; W_hh^T ; (b_ih + b_hh)]
    opack_ref : (H+1, NC)    f32  = [W_out^T ; b_out]
    out_ref   : (B, NC)      f32  logits
    """
    wp = wpack_ref[...]
    emb = wp[0:V, :]                          # (V, E)
    w_ih = wp[V:V + E, :]                     # (E, H)
    w_hh = wp[V + E:V + E + H, :]             # (H, H)
    bias = wp[V + E + H:V + E + H + 1, :]     # (1, H)  (= b_ih + b_hh)

    op = opack_ref[...]
    w_out = op[0:H, :]                        # (H, NC)
    b_out = op[H:H + 1, :]                    # (1, NC)

    # ---- embedding lookup as a one-hot MXU matmul (exact gather) ----
    tok = tok_ref[...]                                               # (T*B, 1) int32
    vocab_ids = jax.lax.broadcasted_iota(jnp.int32, (T * B, V), 1)
    onehot = (tok == vocab_ids).astype(jnp.float32)                  # (T*B, V)
    x_emb = jnp.dot(onehot, emb, preferred_element_type=jnp.float32)  # (T*B, E)

    # ---- fused input projection + both RNN biases for ALL timesteps in one matmul ----
    xin = jnp.dot(x_emb, w_ih, preferred_element_type=jnp.float32) + bias  # (T*B, H)

    # ---- Elman recurrence (sequential in T, statically unrolled; h0 = 0) ----
    h = jnp.tanh(xin[0:B, :])                                        # t = 0 (h0 @ W_hh == 0)
    for t in range(1, T):
        x_t = xin[t * B:(t + 1) * B, :]                              # (B, H), static slice
        h = jnp.tanh(x_t + jnp.dot(h, w_hh, preferred_element_type=jnp.float32))

    # ---- LastTimeStep (final hidden state) -> classifier head ----
    out_ref[...] = jnp.dot(h, w_out, preferred_element_type=jnp.float32) + b_out


def rnn_packed_forward(tokens, params):
    """tokens: (B, T) int32.  params in PyTorch layout (W_ih:(H,E), W_hh:(H,H), W_out:(NC,H))."""
    emb, w_ih, b_ih, w_hh, b_hh, w_out, b_out = params

    # Pack parameters into two contiguous arrays (3 input DMAs total incl. tokens).
    wpack = jnp.concatenate(
        [emb, w_ih.T, w_hh.T, (b_ih + b_hh)[None, :]], axis=0).astype(jnp.float32)   # (V+E+H+1, H)
    opack = jnp.concatenate([w_out.T, b_out[None, :]], axis=0).astype(jnp.float32)   # (H+1, NC)
    tok_tm = tokens.T.reshape(T * B, 1).astype(jnp.int32)                            # time-major

    return pl.pallas_call(
        rnn_packed_kernel,
        out_shape=jax.ShapeDtypeStruct((B, NC), jnp.float32),
        grid_spec=pltpu.PrefetchScalarGridSpec(
            num_scalar_prefetch=0,
            grid=(1,),                                   # collapsed grid: one program
            in_specs=[
                pl.BlockSpec((T * B, 1), lambda i: (0, 0)),
                pl.BlockSpec((V + E + H + 1, H), lambda i: (0, 0)),
                pl.BlockSpec((H + 1, NC), lambda i: (0, 0)),
            ],
            out_specs=pl.BlockSpec((B, NC), lambda i: (0, 0)),
        ),
        compiler_params=pltpu.CompilerParams(
            dimension_semantics=("arbitrary",)),
    )(tok_tm, wpack, opack)


# ---------------- pure-JAX reference (PyTorch semantics) ----------------
def reference_forward(tokens, params):
    emb, w_ih, b_ih, w_hh, b_hh, w_out, b_out = params
    x = emb[tokens]                                   # (B, T, E) embedding lookup
    h = jnp.zeros((B, H), jnp.float32)
    for t in range(T):
        h = jnp.tanh(x[:, t, :] @ w_ih.T + b_ih + h @ w_hh.T + b_hh)
    # LastTimeStep: final hidden state of the (single, unidirectional) layer -> (B, H)
    return h @ w_out.T + b_out                        # (B, NC)


def make_params(key):
    ks = jax.random.split(key, 7)
    s = 0.1
    n = lambda k, shape: (s * jax.random.normal(k, shape)).astype(jnp.float32)
    emb = n(ks[0], (V, E))
    w_ih = n(ks[1], (H, E))       # PyTorch weight_ih_l0: (hidden, input)
    b_ih = n(ks[2], (H,))
    w_hh = n(ks[3], (H, H))
    b_hh = n(ks[4], (H,))
    w_out = n(ks[5], (NC, H))     # PyTorch Linear: (out, in)
    b_out = n(ks[6], (NC,))
    return emb, w_ih, b_ih, w_hh, b_hh, w_out, b_out


if __name__ == "__main__":
    key = jax.random.PRNGKey(0)
    ktok, kp = jax.random.split(key)
    tokens = jax.random.randint(ktok, (B, T), 0, V, dtype=jnp.int32)
    params = make_params(kp)

    out = jax.block_until_ready(rnn_packed_forward(tokens, params))
    ref = jax.block_until_ready(reference_forward(tokens, params))
    np.testing.assert_allclose(np.asarray(out), np.asarray(ref), rtol=1e-3, atol=1e-5)

    print("KERNEL_OK")
</pallas_src>

<mosaic_0001>
module attributes {stable_mosaic.version = 11 : i64} {
  func.func @rnn_packed_kernel(%arg0: i32, %arg1: memref<16x1xi32, #tpu.memory_space<vmem>>, %arg2: memref<97x32xf32, #tpu.memory_space<vmem>>, %arg3: memref<33x4xf32, #tpu.memory_space<vmem>>, %arg4: memref<2x4xf32, #tpu.memory_space<vmem>>) attributes {dimension_semantics = [#tpu.dimension_semantics<arbitrary>], iteration_bounds = array<i64: 1>, scalar_prefetch = 0 : i64, scratch_operands = 0 : i64, tpu.core_type = #tpu.core_type<tc>, window_params = [{pipeline_mode = #tpu.pipeline_mode<synchronous>, transform_indices = @transform_0, window_bounds = array<i64: 16, 1>}, {pipeline_mode = #tpu.pipeline_mode<synchronous>, transform_indices = @transform_1, window_bounds = array<i64: 97, 32>}, {pipeline_mode = #tpu.pipeline_mode<synchronous>, transform_indices = @transform_2, window_bounds = array<i64: 33, 4>}, {pipeline_mode = #tpu.pipeline_mode<synchronous>, transform_indices = @transform_3, window_bounds = array<i64: 2, 4>}]} {
    %c0 = arith.constant 0 : index
    %c0_0 = arith.constant 0 : index
    %0 = vector.load %arg2[%c0, %c0_0] : memref<97x32xf32, #tpu.memory_space<vmem>>, vector<97x32xf32>
    %1 = vector.extract_strided_slice %0 {offsets = [0, 0], sizes = [32, 32], strides = [1, 1]} : vector<97x32xf32> to vector<32x32xf32>
    %2 = vector.extract_strided_slice %0 {offsets = [32, 0], sizes = [32, 32], strides = [1, 1]} : vector<97x32xf32> to vector<32x32xf32>
    %3 = vector.extract_strided_slice %0 {offsets = [64, 0], sizes = [32, 32], strides = [1, 1]} : vector<97x32xf32> to vector<32x32xf32>
    %4 = vector.extract_strided_slice %0 {offsets = [96, 0], sizes = [1, 32], strides = [1, 1]} : vector<97x32xf32> to vector<1x32xf32>
    %c0_1 = arith.constant 0 : index
    %c0_2 = arith.constant 0 : index
    %5 = vector.load %arg3[%c0_1, %c0_2] : memref<33x4xf32, #tpu.memory_space<vmem>>, vector<33x4xf32>
    %6 = vector.extract_strided_slice %5 {offsets = [0, 0], sizes = [32, 4], strides = [1, 1]} : vector<33x4xf32> to vector<32x4xf32>
    %7 = vector.extract_strided_slice %5 {offsets = [32, 0], sizes = [1, 4], strides = [1, 1]} : vector<33x4xf32> to vector<1x4xf32>
    %c0_3 = arith.constant 0 : index
    %c0_4 = arith.constant 0 : index
    %8 = vector.load %arg1[%c0_3, %c0_4] : memref<16x1xi32, #tpu.memory_space<vmem>>, vector<16x1xi32>
    %9 = tpu.iota {dimensions = array<i32: 1>} : vector<16x32xi32>
    %10 = vector.broadcast %8 : vector<16x1xi32> to vector<16x32xi32>
    %11 = arith.cmpi eq, %10, %9 : vector<16x32xi32>
    %12 = arith.extui %11 : vector<16x32xi1> to vector<16x32xi32>
    %13 = arith.sitofp %12 : vector<16x32xi32> to vector<16x32xf32>
    %cst = arith.constant dense<0.000000e+00> : vector<16x32xf32>
    %14 = tpu.matmul %13, %1, %cst {dimension_numbers = #tpu.dot_dimension_numbers<[1], [0], [0], [1], [0, 0, 1, 1], [], []>} : vector<16x32xf32>, vector<32x32xf32>, vector<16x32xf32> -> vector<16x32xf32>
    %cst_5 = arith.constant dense<0.000000e+00> : vector<16x32xf32>
    %15 = tpu.matmul %14, %2, %cst_5 {dimension_numbers = #tpu.dot_dimension_numbers<[1], [0], [0], [1], [0, 0, 1, 1], [], []>} : vector<16x32xf32>, vector<32x32xf32>, vector<16x32xf32> -> vector<16x32xf32>
    %16 = vector.broadcast %4 : vector<1x32xf32> to vector<16x32xf32>
    %17 = arith.addf %15, %16 : vector<16x32xf32>
    %18 = vector.extract_strided_slice %17 {offsets = [0, 0], sizes = [2, 32], strides = [1, 1]} : vector<16x32xf32> to vector<2x32xf32>
    %19 = math.tanh %18 : vector<2x32xf32>
    %20 = vector.extract_strided_slice %17 {offsets = [2, 0], sizes = [2, 32], strides = [1, 1]} : vector<16x32xf32> to vector<2x32xf32>
    %cst_6 = arith.constant dense<0.000000e+00> : vector<2x32xf32>
    %21 = tpu.matmul %19, %3, %cst_6 {dimension_numbers = #tpu.dot_dimension_numbers<[1], [0], [0], [1], [0, 0, 1, 1], [], []>} : vector<2x32xf32>, vector<32x32xf32>, vector<2x32xf32> -> vector<2x32xf32>
    %22 = arith.addf %20, %21 : vector<2x32xf32>
    %23 = math.tanh %22 : vector<2x32xf32>
    %24 = vector.extract_strided_slice %17 {offsets = [4, 0], sizes = [2, 32], strides = [1, 1]} : vector<16x32xf32> to vector<2x32xf32>
    %cst_7 = arith.constant dense<0.000000e+00> : vector<2x32xf32>
    %25 = tpu.matmul %23, %3, %cst_7 {dimension_numbers = #tpu.dot_dimension_numbers<[1], [0], [0], [1], [0, 0, 1, 1], [], []>} : vector<2x32xf32>, vector<32x32xf32>, vector<2x32xf32> -> vector<2x32xf32>
    %26 = arith.addf %24, %25 : vector<2x32xf32>
    %27 = math.tanh %26 : vector<2x32xf32>
    %28 = vector.extract_strided_slice %17 {offsets = [6, 0], sizes = [2, 32], strides = [1, 1]} : vector<16x32xf32> to vector<2x32xf32>
    %cst_8 = arith.constant dense<0.000000e+00> : vector<2x32xf32>
    %29 = tpu.matmul %27, %3, %cst_8 {dimension_numbers = #tpu.dot_dimension_numbers<[1], [0], [0], [1], [0, 0, 1, 1], [], []>} : vector<2x32xf32>, vector<32x32xf32>, vector<2x32xf32> -> vector<2x32xf32>
    %30 = arith.addf %28, %29 : vector<2x32xf32>
    %31 = math.tanh %30 : vector<2x32xf32>
    %32 = vector.extract_strided_slice %17 {offsets = [8, 0], sizes = [2, 32], strides = [1, 1]} : vector<16x32xf32> to vector<2x32xf32>
    %cst_9 = arith.constant dense<0.000000e+00> : vector<2x32xf32>
    %33 = tpu.matmul %31, %3, %cst_9 {dimension_numbers = #tpu.dot_dimension_numbers<[1], [0], [0], [1], [0, 0, 1, 1], [], []>} : vector<2x32xf32>, vector<32x32xf32>, vector<2x32xf32> -> vector<2x32xf32>
    %34 = arith.addf %32, %33 : vector<2x32xf32>
    %35 = math.tanh %34 : vector<2x32xf32>
    %36 = vector.extract_strided_slice %17 {offsets = [10, 0], sizes = [2, 32], strides = [1, 1]} : vector<16x32xf32> to vector<2x32xf32>
    %cst_10 = arith.constant dense<0.000000e+00> : vector<2x32xf32>
    %37 = tpu.matmul %35, %3, %cst_10 {dimension_numbers = #tpu.dot_dimension_numbers<[1], [0], [0], [1], [0, 0, 1, 1], [], []>} : vector<2x32xf32>, vector<32x32xf32>, vector<2x32xf32> -> vector<2x32xf32>
    %38 = arith.addf %36, %37 : vector<2x32xf32>
    %39 = math.tanh %38 : vector<2x32xf32>
    %40 = vector.extract_strided_slice %17 {offsets = [12, 0], sizes = [2, 32], strides = [1, 1]} : vector<16x32xf32> to vector<2x32xf32>
    %cst_11 = arith.constant dense<0.000000e+00> : vector<2x32xf32>
    %41 = tpu.matmul %39, %3, %cst_11 {dimension_numbers = #tpu.dot_dimension_numbers<[1], [0], [0], [1], [0, 0, 1, 1], [], []>} : vector<2x32xf32>, vector<32x32xf32>, vector<2x32xf32> -> vector<2x32xf32>
    %42 = arith.addf %40, %41 : vector<2x32xf32>
    %43 = math.tanh %42 : vector<2x32xf32>
    %44 = vector.extract_strided_slice %17 {offsets = [14, 0], sizes = [2, 32], strides = [1, 1]} : vector<16x32xf32> to vector<2x32xf32>
    %cst_12 = arith.constant dense<0.000000e+00> : vector<2x32xf32>
    %45 = tpu.matmul %43, %3, %cst_12 {dimension_numbers = #tpu.dot_dimension_numbers<[1], [0], [0], [1], [0, 0, 1, 1], [], []>} : vector<2x32xf32>, vector<32x32xf32>, vector<2x32xf32> -> vector<2x32xf32>
    %46 = arith.addf %44, %45 : vector<2x32xf32>
    %47 = math.tanh %46 : vector<2x32xf32>
    %cst_13 = arith.constant dense<0.000000e+00> : vector<2x4xf32>
    %48 = tpu.matmul %47, %6, %cst_13 {dimension_numbers = #tpu.dot_dimension_numbers<[1], [0], [0], [1], [0, 0, 1, 1], [], []>} : vector<2x32xf32>, vector<32x4xf32>, vector<2x4xf32> -> vector<2x4xf32>
    %49 = vector.broadcast %7 : vector<1x4xf32> to vector<2x4xf32>
    %50 = arith.addf %48, %49 : vector<2x4xf32>
    %c0_14 = arith.constant 0 : index
    %c0_15 = arith.constant 0 : index
    %51 = vector.load %arg4[%c0_14, %c0_15] : memref<2x4xf32, #tpu.memory_space<vmem>>, vector<2x4xf32>
    tpu.vector_store %arg4[%c0_14, %c0_15], %50 {strides = array<i32>} : memref<2x4xf32, #tpu.memory_space<vmem>>, vector<2x4xf32>,
    return
  }
  func.func @transform_0(%arg0: i32) -> (i32, i32) {
    %c0_i32 = arith.constant 0 : i32
    %c0_i32_0 = arith.constant 0 : i32
    %c0_i32_1 = arith.constant 0 : i32
    return %c0_i32, %c0_i32_0 : i32, i32
  }
  func.func @transform_1(%arg0: i32) -> (i32, i32) {
    %c0_i32 = arith.constant 0 : i32
    %c0_i32_0 = arith.constant 0 : i32
    %c0_i32_1 = arith.constant 0 : i32
    return %c0_i32, %c0_i32_0 : i32, i32
  }
  func.func @transform_2(%arg0: i32) -> (i32, i32) {
    %c0_i32 = arith.constant 0 : i32
    %c0_i32_0 = arith.constant 0 : i32
    %c0_i32_1 = arith.constant 0 : i32
    return %c0_i32, %c0_i32_0 : i32, i32
  }
  func.func @transform_3(%arg0: i32) -> (i32, i32) {
    %c0_i32 = arith.constant 0 : i32
    %c0_i32_0 = arith.constant 0 : i32
    %c0_i32_1 = arith.constant 0 : i32
    return %c0_i32, %c0_i32_0 : i32, i32
  }
}

</mosaic_0001>

<llo_original>
// kernel: tpu_custom_call.1
$region0: #{tpu_custom_call.1}
  #allocation0 [shape = 'u32[]', space=smem, size = 0x4, offset = 0x4, fixed_abs, tag = 'smem constant byte address 0x4 - core index']
  #allocation1 [shape = 'u32[144,128]{1,0:T(1,128)}', space=vmem, size = 0x12000, scoped, tag = 'internal scratch']
  %s0 = inlined_call_operand.vmem [shape: s32[16,1], index: 0, kind: input, shape index: {}]
  %s1 = inlined_call_operand.vmem [shape: f32[97,32], index: 1, kind: input, shape index: {}]
  %s2 = inlined_call_operand.vmem [shape: f32[33,4], index: 2, kind: input, shape index: {}]
  %s3 = inlined_call_operand.hbm [shape: f32[2,4], index: 3, kind: output, shape index: {}]
  %s4 = sld [smem:[#allocation0]]
  $region22: #{tpu_custom_call.1} parent=0
    _
  %s6 = ssub.s32 1, %s4
  %s7 = scalar_select 0, %s6, %s4
  $region1: #{tpu_custom_call.1} parent=0
    #allocation2 [shape = 'u8[1024]{0}', space=vmem, size = 0x400, scoped, tag = 'output window, operand 0, single buffered']
    #allocation3 [shape = 's32[1]{0}', space=sflag, size = 0x4, scoped, tag = 'scoped memory for tpu_custom_call.1']
    %8 = vsyncpa [#allocation3], 0
    // Predicated region
    $region2: #{tpu_custom_call.1} parent=1 // pred_check
      _
    $region3: #{tpu_custom_call.1} parent=1 // pred_check_branch
      %10 = sbr.rel (0) target = $region5
    $region4: #{tpu_custom_call.1} parent=1 // pred_region
      _
    $region5: #{tpu_custom_call.1} parent=1 // pred_fallthru
      _
    // Predicated region
    $region6: #{tpu_custom_call.1} parent=1 // pred_check
      _
    $region7: #{tpu_custom_call.1} parent=1 // pred_check_branch
      %12 = sbr.rel (0) target = $region9
    $region8: #{tpu_custom_call.1} parent=1 // pred_region
      _
    $region9: #{tpu_custom_call.1} parent=1 // pred_fallthru
      _
    // Predicated region
    $region10: #{tpu_custom_call.1} parent=1 // pred_check
      _
    $region11: #{tpu_custom_call.1} parent=1 // pred_check_branch
      %14 = sbr.rel (0) target = $region13
    $region12: #{tpu_custom_call.1} parent=1 // pred_region
      _
    $region13: #{tpu_custom_call.1} parent=1 // pred_fallthru
      _
    %v15 = vld [vmem:[%s1] sm:$0xff]
    %v16 = vld [vmem:[%s1 + $0x8] sm:$0xff]
    %v17 = vld [vmem:[%s1 + $0x10] sm:$0xff]
    %v18 = vld [vmem:[%s1 + $0x18] sm:$0xff]
    %v19 = vld [vmem:[%s1 + $0x20] sm:$0xff]
    %v20 = vld [vmem:[%s1 + $0x28] sm:$0xff]
    %v21 = vld [vmem:[%s1 + $0x30] sm:$0xff]
    %v22 = vld [vmem:[%s1 + $0x38] sm:$0xff]
    %v23 = vld [vmem:[%s1 + $0x40] sm:$0xff]
    %v24 = vld [vmem:[%s1 + $0x48] sm:$0xff]
    %v25 = vld [vmem:[%s1 + $0x50] sm:$0xff]
    %v26 = vld [vmem:[%s1 + $0x58] sm:$0xff]
    %v27 = vld [vmem:[%s1 + $0x60] sm:$0x1]
    %v28 = vld [vmem:[%s2] sm:$0xff]
    %v29 = vld [vmem:[%s2 + $0x8] sm:$0xff]
    %v30 = vld [vmem:[%s2 + $0x10] sm:$0xff]
    %v31 = vld [vmem:[%s2 + $0x18] sm:$0xff]
    %v32 = vld [vmem:[%s2 + $0x20] sm:$0x1]
    %v33 = vld [vmem:[%s0] sm:$0xff]
    %v34 = vld [vmem:[%s0 + $0x8] sm:$0xff]
    %v35 = vlaneseq
    %v36 = vand.u32 %v35, 127
    %37 = vset.pattern.permute.xlu0 0
    %38 = vperm.xlu0 %37, %v33
    %v39 = vpop.permute.xlu0 %38
    %40 = vset.pattern.permute.xlu0 0
    %41 = vperm.xlu0 %40, %v34
    %v42 = vpop.permute.xlu0 %41
    %vm43 = vcmp.eq.s32.totalorder %v39, %v36
    %vm44 = vcmp.eq.s32.totalorder %v42, %v36
    %v45 = vsel %vm43, 1, 0
    %v46 = vsel %vm44, 1, 0
    %v47 = vcvt.s32.f32 %v45
    %v48 = vcvt.s32.f32 %v46
    %vm49 = vcmask 261120
    %v51 = vsel %vm49, %v47, 0
    %v54 = vsel %vm49, %v48, 0
    %56 = vmatprep.subr.mxu0 0.0
    %57 = vmatpush1.msra.mxu0 0.0
    %58 = vmatprep.subr.mxu0 0.0
    %59 = vmatpush1.msra.mxu0 0.0
    %60 = vmatprep.subr.mxu0 0.0
    %61 = vmatpush1.msra.mxu0 0.0
    %62 = vmatprep.subr.mxu0 0.0
    %63 = vmatpush1.msra.mxu0 0.0
    %64 = vmatprep.subr.mxu0 0.0
    %65 = vmatpush1.msra.mxu0 0.0
    %66 = vmatprep.subr.mxu0 0.0
    %67 = vmatpush1.msra.mxu0 0.0
    %68 = vmatprep.subr.mxu0 0.0
    %69 = vmatpush1.msra.mxu0 0.0
    %70 = vmatprep.subr.mxu0 0.0
    %71 = vmatpush1.msra.mxu0 0.0
    %72 = vmatprep.subr.mxu0 0.0
    %73 = vmatpush1.msra.mxu0 0.0
    %74 = vmatprep.subr.mxu0 0.0
    %75 = vmatpush1.msra.mxu0 0.0
    %76 = vmatprep.subr.mxu0 0.0
    %77 = vmatpush1.msra.mxu0 0.0
    %78 = vmatprep.subr.mxu0 0.0
    %79 = vmatpush1.msra.mxu0 0.0
    %80 = vmatprep.subr.mxu0 0.0
    %81 = vmatpush1.msra.mxu0 %v18
    %82 = vmatprep.subr.mxu0 0.0
    %83 = vmatpush1.msra.mxu0 %v17
    %84 = vmatprep.subr.mxu0 0.0
    %85 = vmatpush1.msra.mxu0 %v16
    %86 = vmatprep.subr.mxu0 0.0
    %87 = vmatpush1.msra.mxu0 %v15
    %88 = vmatprep.subr.mxu0 0.0
    %89 = vmatpush2.msra.mxu0 0.0
    %90 = vmatprep.subr.mxu0 0.0
    %91 = vmatpush2.msra.mxu0 0.0
    %92 = vmatprep.subr.mxu0 0.0
    %93 = vmatpush2.msra.mxu0 0.0
    %94 = vmatprep.subr.mxu0 0.0
    %95 = vmatpush2.msra.mxu0 0.0
    %96 = vmatprep.subr.mxu0 0.0
    %97 = vmatpush2.msra.mxu0 0.0
    %98 = vmatprep.subr.mxu0 0.0
    %99 = vmatpush2.msra.mxu0 0.0
    %100 = vmatprep.subr.mxu0 0.0
    %101 = vmatpush2.msra.mxu0 0.0
    %102 = vmatprep.subr.mxu0 0.0
    %103 = vmatpush2.msra.mxu0 0.0
    %104 = vmatprep.subr.mxu0 0.0
    %105 = vmatpush2.msra.mxu0 0.0
    %106 = vmatprep.subr.mxu0 0.0
    %107 = vmatpush2.msra.mxu0 0.0
    %108 = vmatprep.subr.mxu0 0.0
    %109 = vmatpush2.msra.mxu0 0.0
    %110 = vmatprep.subr.mxu0 0.0
    %111 = vmatpush2.msra.mxu0 0.0
    %112 = vmatprep.subr.mxu0 0.0
    %113 = vmatpush2.msra.mxu0 0.0
    %114 = vmatprep.subr.mxu0 0.0
    %115 = vmatpush2.msra.mxu0 0.0
    %116 = vmatprep.subr.mxu0 0.0
    %117 = vmatpush2.msra.mxu0 0.0
    %118 = vmatprep.subr.mxu0 0.0
    %119 = vmatpush2.msra.mxu0 0.0
    %120 = vmatprep.mubr.f32.mxu0 0.0
    %121 = vmatmul.mubr.f32.gmra.mxu0 %v51
    %v122 = vpop.f32.mrf.mxu0
    %v123 = vadd.f32 0.0, %v122
    %v124 = vpop.f32.mrf.mxu0
    %125 = vmatprep.mubr.f32.mxu0 0.0
    %126 = vmatmul.mubr.f32.gmra.mxu0 %v54
    %v127 = vpop.f32.mrf.mxu0
    %v128 = vadd.f32 0.0, %v127
    %v129 = vpop.f32.mrf.mxu0
    %130 = vdwg.mxu0
    %v131 = vlaneseq
    %v132 = vshrl.u32 %v131, 7
    %v133 = vsub.s32 0, %v132
    %v134 = vrot.slane %v27, %v133
    %v136 = vsel %vm49, %v123, 0
    %v139 = vsel %vm49, %v128, 0
    %141 = vmatprep.subr.mxu0 0.0
    %142 = vmatpush1.msra.mxu0 0.0
    %143 = vmatprep.subr.mxu0 0.0
    %144 = vmatpush1.msra.mxu0 0.0
    %145 = vmatprep.subr.mxu0 0.0
    %146 = vmatpush1.msra.mxu0 0.0
    %147 = vmatprep.subr.mxu0 0.0
    %148 = vmatpush1.msra.mxu0 0.0
    %149 = vmatprep.subr.mxu0 0.0
    %150 = vmatpush1.msra.mxu0 0.0
    %151 = vmatprep.subr.mxu0 0.0
    %152 = vmatpush1.msra.mxu0 0.0
    %153 = vmatprep.subr.mxu0 0.0
    %154 = vmatpush1.msra.mxu0 0.0
    %155 = vmatprep.subr.mxu0 0.0
    %156 = vmatpush1.msra.mxu0 0.0
    %157 = vmatprep.subr.mxu0 0.0
    %158 = vmatpush1.msra.mxu0 0.0
    %159 = vmatprep.subr.mxu0 0.0
    %160 = vmatpush1.msra.mxu0 0.0
    %161 = vmatprep.subr.mxu0 0.0
    %162 = vmatpush1.msra.mxu0 0.0
    %163 = vmatprep.subr.mxu0 0.0
    %164 = vmatpush1.msra.mxu0 0.0
    %165 = vmatprep.subr.mxu0 0.0
    %166 = vmatpush1.msra.mxu0 %v22
    %167 = vmatprep.subr.mxu0 0.0
    %168 = vmatpush1.msra.mxu0 %v21
    %169 = vmatprep.subr.mxu0 0.0
    %170 = vmatpush1.msra.mxu0 %v20
    %171 = vmatprep.subr.mxu0 0.0
    %172 = vmatpush1.msra.mxu0 %v19
    %173 = vmatprep.subr.mxu0 0.0
    %174 = vmatpush2.msra.mxu0 0.0
    %175 = vmatprep.subr.mxu0 0.0
    %176 = vmatpush2.msra.mxu0 0.0
    %177 = vmatprep.subr.mxu0 0.0
    %178 = vmatpush2.msra.mxu0 0.0
    %179 = vmatprep.subr.mxu0 0.0
    %180 = vmatpush2.msra.mxu0 0.0
    %181 = vmatprep.subr.mxu0 0.0
    %182 = vmatpush2.msra.mxu0 0.0
    %183 = vmatprep.subr.mxu0 0.0
    %184 = vmatpush2.msra.mxu0 0.0
    %185 = vmatprep.subr.mxu0 0.0
    %186 = vmatpush2.msra.mxu0 0.0
    %187 = vmatprep.subr.mxu0 0.0
    %188 = vmatpush2.msra.mxu0 0.0
    %189 = vmatprep.subr.mxu0 0.0
    %190 = vmatpush2.msra.mxu0 0.0
    %191 = vmatprep.subr.mxu0 0.0
    %192 = vmatpush2.msra.mxu0 0.0
    %193 = vmatprep.subr.mxu0 0.0
    %194 = vmatpush2.msra.mxu0 0.0
    %195 = vmatprep.subr.mxu0 0.0
    %196 = vmatpush2.msra.mxu0 0.0
    %197 = vmatprep.subr.mxu0 0.0
    %198 = vmatpush2.msra.mxu0 0.0
    %199 = vmatprep.subr.mxu0 0.0
    %200 = vmatpush2.msra.mxu0 0.0
    %201 = vmatprep.subr.mxu0 0.0
    %202 = vmatpush2.msra.mxu0 0.0
    %203 = vmatprep.subr.mxu0 0.0
    %204 = vmatpush2.msra.mxu0 0.0
    %205 = vmatprep.mubr.f32.mxu0 0.0
    %206 = vmatmul.mubr.f32.gmra.mxu0 %v136
    %v207 = vpop.f32.mrf.mxu0
    %v208 = vadd.f32 %v134, %v207
    %v209 = vpop.f32.mrf.mxu0
    %210 = vmatprep.mubr.f32.mxu0 0.0
    %211 = vmatmul.mubr.f32.gmra.mxu0 %v139
    %v212 = vpop.f32.mrf.mxu0
    %v213 = vadd.f32 %v134, %v212
    %v214 = vpop.f32.mrf.mxu0
    %215 = vdwg.mxu0
    %v216 = vtanh.pop %v208
    %v218 = vsel %vm49, %v216, 0
    %220 = vmatprep.subr.mxu0 0.0
    %221 = vmatpush1.msra.mxu0 0.0
    %222 = vmatprep.subr.mxu0 0.0
    %223 = vmatpush1.msra.mxu0 0.0
    %224 = vmatprep.subr.mxu0 0.0
    %225 = vmatpush1.msra.mxu0 0.0
    %226 = vmatprep.subr.mxu0 0.0
    %227 = vmatpush1.msra.mxu0 0.0
    %228 = vmatprep.subr.mxu0 0.0
    %229 = vmatpush1.msra.mxu0 0.0
    %230 = vmatprep.subr.mxu0 0.0
    %231 = vmatpush1.msra.mxu0 0.0
    %232 = vmatprep.subr.mxu0 0.0
    %233 = vmatpush1.msra.mxu0 0.0
    %234 = vmatprep.subr.mxu0 0.0
    %235 = vmatpush1.msra.mxu0 0.0
    %236 = vmatprep.subr.mxu0 0.0
    %237 = vmatpush1.msra.mxu0 0.0
    %238 = vmatprep.subr.mxu0 0.0
    %239 = vmatpush1.msra.mxu0 0.0
    %240 = vmatprep.subr.mxu0 0.0
    %241 = vmatpush1.msra.mxu0 0.0
    %242 = vmatprep.subr.mxu0 0.0
    %243 = vmatpush1.msra.mxu0 0.0
    %244 = vmatprep.subr.mxu0 0.0
    %245 = vmatpush1.msra.mxu0 %v26
    %246 = vmatprep.subr.mxu0 0.0
    %247 = vmatpush1.msra.mxu0 %v25
    %248 = vmatprep.subr.mxu0 0.0
    %249 = vmatpush1.msra.mxu0 %v24
    %250 = vmatprep.subr.mxu0 0.0
    %251 = vmatpush1.msra.mxu0 %v23
    %252 = vmatprep.subr.mxu0 0.0
    %253 = vmatpush2.msra.mxu0 0.0
    %254 = vmatprep.subr.mxu0 0.0
    %255 = vmatpush2.msra.mxu0 0.0
    %256 = vmatprep.subr.mxu0 0.0
    %257 = vmatpush2.msra.mxu0 0.0
    %258 = vmatprep.subr.mxu0 0.0
    %259 = vmatpush2.msra.mxu0 0.0
    %260 = vmatprep.subr.mxu0 0.0
    %261 = vmatpush2.msra.mxu0 0.0
    %262 = vmatprep.subr.mxu0 0.0
    %263 = vmatpush2.msra.mxu0 0.0
    %264 = vmatprep.subr.mxu0 0.0
    %265 = vmatpush2.msra.mxu0 0.0
    %266 = vmatprep.subr.mxu0 0.0
    %267 = vmatpush2.msra.mxu0 0.0
    %268 = vmatprep.subr.mxu0 0.0
    %269 = vmatpush2.msra.mxu0 0.0
    %270 = vmatprep.subr.mxu0 0.0
    %271 = vmatpush2.msra.mxu0 0.0
    %272 = vmatprep.subr.mxu0 0.0
    %273 = vmatpush2.msra.mxu0 0.0
    %274 = vmatprep.subr.mxu0 0.0
    %275 = vmatpush2.msra.mxu0 0.0
    %276 = vmatprep.subr.mxu0 0.0
    %277 = vmatpush2.msra.mxu0 0.0
    %278 = vmatprep.subr.mxu0 0.0
    %279 = vmatpush2.msra.mxu0 0.0
    %280 = vmatprep.subr.mxu0 0.0
    %281 = vmatpush2.msra.mxu0 0.0
    %282 = vmatprep.subr.mxu0 0.0
    %283 = vmatpush2.msra.mxu0 0.0
    %284 = vmatprep.mubr.f32.mxu0 0.0
    %285 = vmatmul.mubr.f32.gmra.mxu0 %v218
    %v286 = vpop.f32.mrf.mxu0
    %v287 = vadd.f32 0.0, %v286
    %v288 = vpop.f32.mrf.mxu0
    %289 = vdwg.mxu0
    %v291 = vrot.slane %v287, 6
    %v293 = vadd.f32 %v208, %v291
    %v294 = vtanh.pop %v293
    %v296 = vrot.slane %v294, 2
    %v297 = vsel %vm49, %v296, 0
    %299 = vmatprep.subr.mxu0 0.0
    %300 = vmatpush1.msra.mxu0 0.0
    %301 = vmatprep.subr.mxu0 0.0
    %302 = vmatpush1.msra.mxu0 0.0
    %303 = vmatprep.subr.mxu0 0.0
    %304 = vmatpush1.msra.mxu0 0.0
    %305 = vmatprep.subr.mxu0 0.0
    %306 = vmatpush1.msra.mxu0 0.0
    %307 = vmatprep.subr.mxu0 0.0
    %308 = vmatpush1.msra.mxu0 0.0
    %309 = vmatprep.subr.mxu0 0.0
    %310 = vmatpush1.msra.mxu0 0.0
    %311 = vmatprep.subr.mxu0 0.0
    %312 = vmatpush1.msra.mxu0 0.0
    %313 = vmatprep.subr.mxu0 0.0
    %314 = vmatpush1.msra.mxu0 0.0
    %315 = vmatprep.subr.mxu0 0.0
    %316 = vmatpush1.msra.mxu0 0.0
    %317 = vmatprep.subr.mxu0 0.0
    %318 = vmatpush1.msra.mxu0 0.0
    %319 = vmatprep.subr.mxu0 0.0
    %320 = vmatpush1.msra.mxu0 0.0
    %321 = vmatprep.subr.mxu0 0.0
    %322 = vmatpush1.msra.mxu0 0.0
    %323 = vmatprep.subr.mxu0 0.0
    %324 = vmatpush1.msra.mxu0 %v26
    %325 = vmatprep.subr.mxu0 0.0
    %326 = vmatpush1.msra.mxu0 %v25
    %327 = vmatprep.subr.mxu0 0.0
    %328 = vmatpush1.msra.mxu0 %v24
    %329 = vmatprep.subr.mxu0 0.0
    %330 = vmatpush1.msra.mxu0 %v23
    %331 = vmatprep.subr.mxu0 0.0
    %332 = vmatpush2.msra.mxu0 0.0
    %333 = vmatprep.subr.mxu0 0.0
    %334 = vmatpush2.msra.mxu0 0.0
    %335 = vmatprep.subr.mxu0 0.0
    %336 = vmatpush2.msra.mxu0 0.0
    %337 = vmatprep.subr.mxu0 0.0
    %338 = vmatpush2.msra.mxu0 0.0
    %339 = vmatprep.subr.mxu0 0.0
    %340 = vmatpush2.msra.mxu0 0.0
    %341 = vmatprep.subr.mxu0 0.0
    %342 = vmatpush2.msra.mxu0 0.0
    %343 = vmatprep.subr.mxu0 0.0
    %344 = vmatpush2.msra.mxu0 0.0
    %345 = vmatprep.subr.mxu0 0.0
    %346 = vmatpush2.msra.mxu0 0.0
    %347 = vmatprep.subr.mxu0 0.0
    %348 = vmatpush2.msra.mxu0 0.0
    %349 = vmatprep.subr.mxu0 0.0
    %350 = vmatpush2.msra.mxu0 0.0
    %351 = vmatprep.subr.mxu0 0.0
    %352 = vmatpush2.msra.mxu0 0.0
    %353 = vmatprep.subr.mxu0 0.0
    %354 = vmatpush2.msra.mxu0 0.0
    %355 = vmatprep.subr.mxu0 0.0
    %356 = vmatpush2.msra.mxu0 0.0
    %357 = vmatprep.subr.mxu0 0.0
    %358 = vmatpush2.msra.mxu0 0.0
    %359 = vmatprep.subr.mxu0 0.0
    %360 = vmatpush2.msra.mxu0 0.0
    %361 = vmatprep.subr.mxu0 0.0
    %362 = vmatpush2.msra.mxu0 0.0
    %363 = vmatprep.mubr.f32.mxu0 0.0
    %364 = vmatmul.mubr.f32.gmra.mxu0 %v297
    %v365 = vpop.f32.mrf.mxu0
    %v366 = vadd.f32 0.0, %v365
    %v367 = vpop.f32.mrf.mxu0
    %368 = vdwg.mxu0
    %v370 = vrot.slane %v366, 4
    %v372 = vadd.f32 %v208, %v370
    %v373 = vtanh.pop %v372
    %v375 = vrot.slane %v373, 4
    %v376 = vsel %vm49, %v375, 0
    %378 = vmatprep.subr.mxu0 0.0
    %379 = vmatpush1.msra.mxu0 0.0
    %380 = vmatprep.subr.mxu0 0.0
    %381 = vmatpush1.msra.mxu0 0.0
    %382 = vmatprep.subr.mxu0 0.0
    %383 = vmatpush1.msra.mxu0 0.0
    %384 = vmatprep.subr.mxu0 0.0
    %385 = vmatpush1.msra.mxu0 0.0
    %386 = vmatprep.subr.mxu0 0.0
    %387 = vmatpush1.msra.mxu0 0.0
    %388 = vmatprep.subr.mxu0 0.0
    %389 = vmatpush1.msra.mxu0 0.0
    %390 = vmatprep.subr.mxu0 0.0
    %391 = vmatpush1.msra.mxu0 0.0
    %392 = vmatprep.subr.mxu0 0.0
    %393 = vmatpush1.msra.mxu0 0.0
    %394 = vmatprep.subr.mxu0 0.0
    %395 = vmatpush1.msra.mxu0 0.0
    %396 = vmatprep.subr.mxu0 0.0
    %397 = vmatpush1.msra.mxu0 0.0
    %398 = vmatprep.subr.mxu0 0.0
    %399 = vmatpush1.msra.mxu0 0.0
    %400 = vmatprep.subr.mxu0 0.0
    %401 = vmatpush1.msra.mxu0 0.0
    %402 = vmatprep.subr.mxu0 0.0
    %403 = vmatpush1.msra.mxu0 %v26
    %404 = vmatprep.subr.mxu0 0.0
    %405 = vmatpush1.msra.mxu0 %v25
    %406 = vmatprep.subr.mxu0 0.0
    %407 = vmatpush1.msra.mxu0 %v24
    %408 = vmatprep.subr.mxu0 0.0
    %409 = vmatpush1.msra.mxu0 %v23
    %410 = vmatprep.subr.mxu0 0.0
    %411 = vmatpush2.msra.mxu0 0.0
    %412 = vmatprep.subr.mxu0 0.0
    %413 = vmatpush2.msra.mxu0 0.0
    %414 = vmatprep.subr.mxu0 0.0
    %415 = vmatpush2.msra.mxu0 0.0
    %416 = vmatprep.subr.mxu0 0.0
    %417 = vmatpush2.msra.mxu0 0.0
    %418 = vmatprep.subr.mxu0 0.0
    %419 = vmatpush2.msra.mxu0 0.0
    %420 = vmatprep.subr.mxu0 0.0
    %421 = vmatpush2.msra.mxu0 0.0
    %422 = vmatprep.subr.mxu0 0.0
    %423 = vmatpush2.msra.mxu0 0.0
    %424 = vmatprep.subr.mxu0 0.0
    %425 = vmatpush2.msra.mxu0 0.0
    %426 = vmatprep.subr.mxu0 0.0
    %427 = vmatpush2.msra.mxu0 0.0
    %428 = vmatprep.subr.mxu0 0.0
    %429 = vmatpush2.msra.mxu0 0.0
    %430 = vmatprep.subr.mxu0 0.0
    %431 = vmatpush2.msra.mxu0 0.0
    %432 = vmatprep.subr.mxu0 0.0
    %433 = vmatpush2.msra.mxu0 0.0
    %434 = vmatprep.subr.mxu0 0.0
    %435 = vmatpush2.msra.mxu0 0.0
    %436 = vmatprep.subr.mxu0 0.0
    %437 = vmatpush2.msra.mxu0 0.0
    %438 = vmatprep.subr.mxu0 0.0
    %439 = vmatpush2.msra.mxu0 0.0
    %440 = vmatprep.subr.mxu0 0.0
    %441 = vmatpush2.msra.mxu0 0.0
    %442 = vmatprep.mubr.f32.mxu0 0.0
    %443 = vmatmul.mubr.f32.gmra.mxu0 %v376
    %v444 = vpop.f32.mrf.mxu0
    %v445 = vadd.f32 0.0, %v444
    %v446 = vpop.f32.mrf.mxu0
    %447 = vdwg.mxu0
    %v449 = vrot.slane %v445, 2
    %v451 = vadd.f32 %v208, %v449
    %v452 = vtanh.pop %v451
    %v454 = vrot.slane %v452, 6
    %v455 = vsel %vm49, %v454, 0
    %457 = vmatprep.subr.mxu0 0.0
    %458 = vmatpush1.msra.mxu0 0.0
    %459 = vmatprep.subr.mxu0 0.0
    %460 = vmatpush1.msra.mxu0 0.0
    %461 = vmatprep.subr.mxu0 0.0
    %462 = vmatpush1.msra.mxu0 0.0
    %463 = vmatprep.subr.mxu0 0.0
    %464 = vmatpush1.msra.mxu0 0.0
    %465 = vmatprep.subr.mxu0 0.0
    %466 = vmatpush1.msra.mxu0 0.0
    %467 = vmatprep.subr.mxu0 0.0
    %468 = vmatpush1.msra.mxu0 0.0
    %469 = vmatprep.subr.mxu0 0.0
    %470 = vmatpush1.msra.mxu0 0.0
    %471 = vmatprep.subr.mxu0 0.0
    %472 = vmatpush1.msra.mxu0 0.0
    %473 = vmatprep.subr.mxu0 0.0
    %474 = vmatpush1.msra.mxu0 0.0
    %475 = vmatprep.subr.mxu0 0.0
    %476 = vmatpush1.msra.mxu0 0.0
    %477 = vmatprep.subr.mxu0 0.0
    %478 = vmatpush1.msra.mxu0 0.0
    %479 = vmatprep.subr.mxu0 0.0
    %480 = vmatpush1.msra.mxu0 0.0
    %481 = vmatprep.subr.mxu0 0.0
    %482 = vmatpush1.msra.mxu0 %v26
    %483 = vmatprep.subr.mxu0 0.0
    %484 = vmatpush1.msra.mxu0 %v25
    %485 = vmatprep.subr.mxu0 0.0
    %486 = vmatpush1.msra.mxu0 %v24
    %487 = vmatprep.subr.mxu0 0.0
    %488 = vmatpush1.msra.mxu0 %v23
    %489 = vmatprep.subr.mxu0 0.0
    %490 = vmatpush2.msra.mxu0 0.0
    %491 = vmatprep.subr.mxu0 0.0
    %492 = vmatpush2.msra.mxu0 0.0
    %493 = vmatprep.subr.mxu0 0.0
    %494 = vmatpush2.msra.mxu0 0.0
    %495 = vmatprep.subr.mxu0 0.0
    %496 = vmatpush2.msra.mxu0 0.0
    %497 = vmatprep.subr.mxu0 0.0
    %498 = vmatpush2.msra.mxu0 0.0
    %499 = vmatprep.subr.mxu0 0.0
    %500 = vmatpush2.msra.mxu0 0.0
    %501 = vmatprep.subr.mxu0 0.0
    %502 = vmatpush2.msra.mxu0 0.0
    %503 = vmatprep.subr.mxu0 0.0
    %504 = vmatpush2.msra.mxu0 0.0
    %505 = vmatprep.subr.mxu0 0.0
    %506 = vmatpush2.msra.mxu0 0.0
    %507 = vmatprep.subr.mxu0 0.0
    %508 = vmatpush2.msra.mxu0 0.0
    %509 = vmatprep.subr.mxu0 0.0
    %510 = vmatpush2.msra.mxu0 0.0
    %511 = vmatprep.subr.mxu0 0.0
    %512 = vmatpush2.msra.mxu0 0.0
    %513 = vmatprep.subr.mxu0 0.0
    %514 = vmatpush2.msra.mxu0 0.0
    %515 = vmatprep.subr.mxu0 0.0
    %516 = vmatpush2.msra.mxu0 0.0
    %517 = vmatprep.subr.mxu0 0.0
    %518 = vmatpush2.msra.mxu0 0.0
    %519 = vmatprep.subr.mxu0 0.0
    %520 = vmatpush2.msra.mxu0 0.0
    %521 = vmatprep.mubr.f32.mxu0 0.0
    %522 = vmatmul.mubr.f32.gmra.mxu0 %v455
    %v523 = vpop.f32.mrf.mxu0
    %v524 = vadd.f32 0.0, %v523
    %v525 = vpop.f32.mrf.mxu0
    %526 = vdwg.mxu0
    %v527 = vadd.f32 %v213, %v524
    %v528 = vtanh.pop %v527
    %v530 = vsel %vm49, %v528, 0
    %532 = vmatprep.subr.mxu0 0.0
    %533 = vmatpush1.msra.mxu0 0.0
    %534 = vmatprep.subr.mxu0 0.0
    %535 = vmatpush1.msra.mxu0 0.0
    %536 = vmatprep.subr.mxu0 0.0
    %537 = vmatpush1.msra.mxu0 0.0
    %538 = vmatprep.subr.mxu0 0.0
    %539 = vmatpush1.msra.mxu0 0.0
    %540 = vmatprep.subr.mxu0 0.0
    %541 = vmatpush1.msra.mxu0 0.0
    %542 = vmatprep.subr.mxu0 0.0
    %543 = vmatpush1.msra.mxu0 0.0
    %544 = vmatprep.subr.mxu0 0.0
    %545 = vmatpush1.msra.mxu0 0.0
    %546 = vmatprep.subr.mxu0 0.0
    %547 = vmatpush1.msra.mxu0 0.0
    %548 = vmatprep.subr.mxu0 0.0
    %549 = vmatpush1.msra.mxu0 0.0
    %550 = vmatprep.subr.mxu0 0.0
    %551 = vmatpush1.msra.mxu0 0.0
    %552 = vmatprep.subr.mxu0 0.0
    %553 = vmatpush1.msra.mxu0 0.0
    %554 = vmatprep.subr.mxu0 0.0
    %555 = vmatpush1.msra.mxu0 0.0
    %556 = vmatprep.subr.mxu0 0.0
    %557 = vmatpush1.msra.mxu0 %v26
    %558 = vmatprep.subr.mxu0 0.0
    %559 = vmatpush1.msra.mxu0 %v25
    %560 = vmatprep.subr.mxu0 0.0
    %561 = vmatpush1.msra.mxu0 %v24
    %562 = vmatprep.subr.mxu0 0.0
    %563 = vmatpush1.msra.mxu0 %v23
    %564 = vmatprep.subr.mxu0 0.0
    %565 = vmatpush2.msra.mxu0 0.0
    %566 = vmatprep.subr.mxu0 0.0
    %567 = vmatpush2.msra.mxu0 0.0
    %568 = vmatprep.subr.mxu0 0.0
    %569 = vmatpush2.msra.mxu0 0.0
    %570 = vmatprep.subr.mxu0 0.0
    %571 = vmatpush2.msra.mxu0 0.0
    %572 = vmatprep.subr.mxu0 0.0
    %573 = vmatpush2.msra.mxu0 0.0
    %574 = vmatprep.subr.mxu0 0.0
    %575 = vmatpush2.msra.mxu0 0.0
    %576 = vmatprep.subr.mxu0 0.0
    %577 = vmatpush2.msra.mxu0 0.0
    %578 = vmatprep.subr.mxu0 0.0
    %579 = vmatpush2.msra.mxu0 0.0
    %580 = vmatprep.subr.mxu0 0.0
    %581 = vmatpush2.msra.mxu0 0.0
    %582 = vmatprep.subr.mxu0 0.0
    %583 = vmatpush2.msra.mxu0 0.0
    %584 = vmatprep.subr.mxu0 0.0
    %585 = vmatpush2.msra.mxu0 0.0
    %586 = vmatprep.subr.mxu0 0.0
    %587 = vmatpush2.msra.mxu0 0.0
    %588 = vmatprep.subr.mxu0 0.0
    %589 = vmatpush2.msra.mxu0 0.0
    %590 = vmatprep.subr.mxu0 0.0
    %591 = vmatpush2.msra.mxu0 0.0
    %592 = vmatprep.subr.mxu0 0.0
    %593 = vmatpush2.msra.mxu0 0.0
    %594 = vmatprep.subr.mxu0 0.0
    %595 = vmatpush2.msra.mxu0 0.0
    %596 = vmatprep.mubr.f32.mxu0 0.0
    %597 = vmatmul.mubr.f32.gmra.mxu0 %v530
    %v598 = vpop.f32.mrf.mxu0
    %v599 = vadd.f32 0.0, %v598
    %v600 = vpop.f32.mrf.mxu0
    %601 = vdwg.mxu0
    %v603 = vrot.slane %v599, 6
    %v605 = vadd.f32 %v213, %v603
    %v606 = vtanh.pop %v605
    %v608 = vrot.slane %v606, 2
    %v609 = vsel %vm49, %v608, 0
    %611 = vmatprep.subr.mxu0 0.0
    %612 = vmatpush1.msra.mxu0 0.0
    %613 = vmatprep.subr.mxu0 0.0
    %614 = vmatpush1.msra.mxu0 0.0
    %615 = vmatprep.subr.mxu0 0.0
    %616 = vmatpush1.msra.mxu0 0.0
    %617 = vmatprep.subr.mxu0 0.0
    %618 = vmatpush1.msra.mxu0 0.0
    %619 = vmatprep.subr.mxu0 0.0
    %620 = vmatpush1.msra.mxu0 0.0
    %621 = vmatprep.subr.mxu0 0.0
    %622 = vmatpush1.msra.mxu0 0.0
    %623 = vmatprep.subr.mxu0 0.0
    %624 = vmatpush1.msra.mxu0 0.0
    %625 = vmatprep.subr.mxu0 0.0
    %626 = vmatpush1.msra.mxu0 0.0
    %627 = vmatprep.subr.mxu0 0.0
    %628 = vmatpush1.msra.mxu0 0.0
    %629 = vmatprep.subr.mxu0 0.0
    %630 = vmatpush1.msra.mxu0 0.0
    %631 = vmatprep.subr.mxu0 0.0
    %632 = vmatpush1.msra.mxu0 0.0
    %633 = vmatprep.subr.mxu0 0.0
    %634 = vmatpush1.msra.mxu0 0.0
    %635 = vmatprep.subr.mxu0 0.0
    %636 = vmatpush1.msra.mxu0 %v26
    %637 = vmatprep.subr.mxu0 0.0
    %638 = vmatpush1.msra.mxu0 %v25
    %639 = vmatprep.subr.mxu0 0.0
    %640 = vmatpush1.msra.mxu0 %v24
    %641 = vmatprep.subr.mxu0 0.0
    %642 = vmatpush1.msra.mxu0 %v23
    %643 = vmatprep.subr.mxu0 0.0
    %644 = vmatpush2.msra.mxu0 0.0
    %645 = vmatprep.subr.mxu0 0.0
    %646 = vmatpush2.msra.mxu0 0.0
    %647 = vmatprep.subr.mxu0 0.0
    %648 = vmatpush2.msra.mxu0 0.0
    %649 = vmatprep.subr.mxu0 0.0
    %650 = vmatpush2.msra.mxu0 0.0
    %651 = vmatprep.subr.mxu0 0.0
    %652 = vmatpush2.msra.mxu0 0.0
    %653 = vmatprep.subr.mxu0 0.0
    %654 = vmatpush2.msra.mxu0 0.0
    %655 = vmatprep.subr.mxu0 0.0
    %656 = vmatpush2.msra.mxu0 0.0
    %657 = vmatprep.subr.mxu0 0.0
    %658 = vmatpush2.msra.mxu0 0.0
    %659 = vmatprep.subr.mxu0 0.0
    %660 = vmatpush2.msra.mxu0 0.0
    %661 = vmatprep.subr.mxu0 0.0
    %662 = vmatpush2.msra.mxu0 0.0
    %663 = vmatprep.subr.mxu0 0.0
    %664 = vmatpush2.msra.mxu0 0.0
    %665 = vmatprep.subr.mxu0 0.0
    %666 = vmatpush2.msra.mxu0 0.0
    %667 = vmatprep.subr.mxu0 0.0
    %668 = vmatpush2.msra.mxu0 0.0
    %669 = vmatprep.subr.mxu0 0.0
    %670 = vmatpush2.msra.mxu0 0.0
    %671 = vmatprep.subr.mxu0 0.0
    %672 = vmatpush2.msra.mxu0 0.0
    %673 = vmatprep.subr.mxu0 0.0
    %674 = vmatpush2.msra.mxu0 0.0
    %675 = vmatprep.mubr.f32.mxu0 0.0
    %676 = vmatmul.mubr.f32.gmra.mxu0 %v609
    %v677 = vpop.f32.mrf.mxu0
    %v678 = vadd.f32 0.0, %v677
    %v679 = vpop.f32.mrf.mxu0
    %680 = vdwg.mxu0
    %v682 = vrot.slane %v678, 4
    %v684 = vadd.f32 %v213, %v682
    %v685 = vtanh.pop %v684
    %v687 = vrot.slane %v685, 4
    %v688 = vsel %vm49, %v687, 0
    %690 = vmatprep.subr.mxu0 0.0
    %691 = vmatpush1.msra.mxu0 0.0
    %692 = vmatprep.subr.mxu0 0.0
    %693 = vmatpush1.msra.mxu0 0.0
    %694 = vmatprep.subr.mxu0 0.0
    %695 = vmatpush1.msra.mxu0 0.0
    %696 = vmatprep.subr.mxu0 0.0
    %697 = vmatpush1.msra.mxu0 0.0
    %698 = vmatprep.subr.mxu0 0.0
    %699 = vmatpush1.msra.mxu0 0.0
    %700 = vmatprep.subr.mxu0 0.0
    %701 = vmatpush1.msra.mxu0 0.0
    %702 = vmatprep.subr.mxu0 0.0
    %703 = vmatpush1.msra.mxu0 0.0
    %704 = vmatprep.subr.mxu0 0.0
    %705 = vmatpush1.msra.mxu0 0.0
    %706 = vmatprep.subr.mxu0 0.0
    %707 = vmatpush1.msra.mxu0 0.0
    %708 = vmatprep.subr.mxu0 0.0
    %709 = vmatpush1.msra.mxu0 0.0
    %710 = vmatprep.subr.mxu0 0.0
    %711 = vmatpush1.msra.mxu0 0.0
    %712 = vmatprep.subr.mxu0 0.0
    %713 = vmatpush1.msra.mxu0 0.0
    %714 = vmatprep.subr.mxu0 0.0
    %715 = vmatpush1.msra.mxu0 %v26
    %716 = vmatprep.subr.mxu0 0.0
    %717 = vmatpush1.msra.mxu0 %v25
    %718 = vmatprep.subr.mxu0 0.0
    %719 = vmatpush1.msra.mxu0 %v24
    %720 = vmatprep.subr.mxu0 0.0
    %721 = vmatpush1.msra.mxu0 %v23
    %722 = vmatprep.subr.mxu0 0.0
    %723 = vmatpush2.msra.mxu0 0.0
    %724 = vmatprep.subr.mxu0 0.0
    %725 = vmatpush2.msra.mxu0 0.0
    %726 = vmatprep.subr.mxu0 0.0
    %727 = vmatpush2.msra.mxu0 0.0
    %728 = vmatprep.subr.mxu0 0.0
    %729 = vmatpush2.msra.mxu0 0.0
    %730 = vmatprep.subr.mxu0 0.0
    %731 = vmatpush2.msra.mxu0 0.0
    %732 = vmatprep.subr.mxu0 0.0
    %733 = vmatpush2.msra.mxu0 0.0
    %734 = vmatprep.subr.mxu0 0.0
    %735 = vmatpush2.msra.mxu0 0.0
    %736 = vmatprep.subr.mxu0 0.0
    %737 = vmatpush2.msra.mxu0 0.0
    %738 = vmatprep.subr.mxu0 0.0
    %739 = vmatpush2.msra.mxu0 0.0
    %740 = vmatprep.subr.mxu0 0.0
    %741 = vmatpush2.msra.mxu0 0.0
    %742 = vmatprep.subr.mxu0 0.0
    %743 = vmatpush2.msra.mxu0 0.0
    %744 = vmatprep.subr.mxu0 0.0
    %745 = vmatpush2.msra.mxu0 0.0
    %746 = vmatprep.subr.mxu0 0.0
    %747 = vmatpush2.msra.mxu0 0.0
    %748 = vmatprep.subr.mxu0 0.0
    %749 = vmatpush2.msra.mxu0 0.0
    %750 = vmatprep.subr.mxu0 0.0
    %751 = vmatpush2.msra.mxu0 0.0
    %752 = vmatprep.subr.mxu0 0.0
    %753 = vmatpush2.msra.mxu0 0.0
    %754 = vmatprep.mubr.f32.mxu0 0.0
    %755 = vmatmul.mubr.f32.gmra.mxu0 %v688
    %v756 = vpop.f32.mrf.mxu0
    %v757 = vadd.f32 0.0, %v756
    %v758 = vpop.f32.mrf.mxu0
    %759 = vdwg.mxu0
    %v761 = vrot.slane %v757, 2
    %v763 = vadd.f32 %v213, %v761
    %v764 = vtanh.pop %v763
    %v765 = vlaneseq
    %v766 = vshrl.u32 %v765, 7
    %v767 = vsub.s32 0, %v766
    %v768 = vrot.slane %v32, %v767
    %v770 = vrot.slane %v764, 6
    %v771 = vsel %vm49, %v770, 0
    %773 = vmatprep.subr.mxu0 0.0
    %774 = vmatpush1.msra.mxu0 0.0
    %775 = vmatprep.subr.mxu0 0.0
    %776 = vmatpush1.msra.mxu0 0.0
    %777 = vmatprep.subr.mxu0 0.0
    %778 = vmatpush1.msra.mxu0 0.0
    %779 = vmatprep.subr.mxu0 0.0
    %780 = vmatpush1.msra.mxu0 0.0
    %781 = vmatprep.subr.mxu0 0.0
    %782 = vmatpush1.msra.mxu0 0.0
    %783 = vmatprep.subr.mxu0 0.0
    %784 = vmatpush1.msra.mxu0 0.0
    %785 = vmatprep.subr.mxu0 0.0
    %786 = vmatpush1.msra.mxu0 0.0
    %787 = vmatprep.subr.mxu0 0.0
    %788 = vmatpush1.msra.mxu0 0.0
    %789 = vmatprep.subr.mxu0 0.0
    %790 = vmatpush1.msra.mxu0 0.0
    %791 = vmatprep.subr.mxu0 0.0
    %792 = vmatpush1.msra.mxu0 0.0
    %793 = vmatprep.subr.mxu0 0.0
    %794 = vmatpush1.msra.mxu0 0.0
    %795 = vmatprep.subr.mxu0 0.0
    %796 = vmatpush1.msra.mxu0 0.0
    %797 = vmatprep.subr.mxu0 0.0
    %798 = vmatpush1.msra.mxu0 %v31
    %799 = vmatprep.subr.mxu0 0.0
    %800 = vmatpush1.msra.mxu0 %v30
    %801 = vmatprep.subr.mxu0 0.0
    %802 = vmatpush1.msra.mxu0 %v29
    %803 = vmatprep.subr.mxu0 0.0
    %804 = vmatpush1.msra.mxu0 %v28
    %805 = vmatprep.subr.mxu0 0.0
    %806 = vmatpush2.msra.mxu0 0.0
    %807 = vmatprep.subr.mxu0 0.0
    %808 = vmatpush2.msra.mxu0 0.0
    %809 = vmatprep.subr.mxu0 0.0
    %810 = vmatpush2.msra.mxu0 0.0
    %811 = vmatprep.subr.mxu0 0.0
    %812 = vmatpush2.msra.mxu0 0.0
    %813 = vmatprep.subr.mxu0 0.0
    %814 = vmatpush2.msra.mxu0 0.0
    %815 = vmatprep.subr.mxu0 0.0
    %816 = vmatpush2.msra.mxu0 0.0
    %817 = vmatprep.subr.mxu0 0.0
    %818 = vmatpush2.msra.mxu0 0.0
    %819 = vmatprep.subr.mxu0 0.0
    %820 = vmatpush2.msra.mxu0 0.0
    %821 = vmatprep.subr.mxu0 0.0
    %822 = vmatpush2.msra.mxu0 0.0
    %823 = vmatprep.subr.mxu0 0.0
    %824 = vmatpush2.msra.mxu0 0.0
    %825 = vmatprep.subr.mxu0 0.0
    %826 = vmatpush2.msra.mxu0 0.0
    %827 = vmatprep.subr.mxu0 0.0
    %828 = vmatpush2.msra.mxu0 0.0
    %829 = vmatprep.subr.mxu0 0.0
    %830 = vmatpush2.msra.mxu0 0.0
    %831 = vmatprep.subr.mxu0 0.0
    %832 = vmatpush2.msra.mxu0 0.0
    %833 = vmatprep.subr.mxu0 0.0
    %834 = vmatpush2.msra.mxu0 0.0
    %835 = vmatprep.subr.mxu0 0.0
    %836 = vmatpush2.msra.mxu0 0.0
    %837 = vmatprep.mubr.f32.mxu0 0.0
    %838 = vmatmul.mubr.f32.gmra.mxu0 %v771
    %v839 = vpop.f32.mrf.mxu0
    %v840 = vadd.f32 %v768, %v839
    %v841 = vpop.f32.mrf.mxu0
    %842 = vdwg.mxu0
    %vm843 = vcmask 25600
    %844 = vst.msk [vmem:[#allocation2] sm:$0x3] %vm843, %v840
    // Predicated region
    $region14: #{tpu_custom_call.1} parent=1 // pred_check
      _
    $region15: #{tpu_custom_call.1} parent=1 // pred_check_branch
      %846 = sbr.rel (0) target = $region17
    $region16: #{tpu_custom_call.1} parent=1 // pred_region
      %s848 = ssub.s32 32, 32
      %849 = vsyncadd [#allocation3], %s848
      %s851 = sshll.u32 [#allocation2], 4
      %s852 = int_to_ptr.vmem [resolvable:$true] %s851
      %854 = dma.vmem_to_hbm [thread:$0]  %s852, 32, %s3, [#allocation3]
    $region17: #{tpu_custom_call.1} parent=1 // pred_fallthru
      _
    // Predicated region
    $region18: #{tpu_custom_call.1} parent=1 // pred_check
      _
    $region19: #{tpu_custom_call.1} parent=1 // pred_check_branch
      %856 = sbr.rel (0) target = $region21
    $region20: #{tpu_custom_call.1} parent=1 // pred_region
      %857 = dma.done [#allocation3], 32
    $region21: #{tpu_custom_call.1} parent=1 // pred_fallthru
      _
    %858 = vsyncpa [#allocation3], 1

</llo_original>
